<compile_context>
chip_gen: v7x
topology: tpu7x:2x2x1
jax: 0.10.0
libtpu: 0.0.40
codegen_flags: <defaults>
</compile_context>

<pallas_src>
import functools
import math

import numpy as np

import jax
import jax.numpy as jnp
from jax.experimental import pallas as pl
from jax.experimental.pallas import tpu as pltpu


# ----------------------------------------------------------------------------
# small helpers
# ----------------------------------------------------------------------------
def _round_up(x, m):
    return ((x + m - 1) // m) * m


def _cdiv(a, b):
    return -(-a // b)


def _sub_pad(n, itemsize):
    """Rows after sublane padding: 8 for 32-bit, 16 for 16-bit, 32 for 8-bit."""
    return _round_up(n, 8 * max(1, 4 // itemsize))


def _tile_bytes(rows, cols, dtype):
    """VMEM bytes of one (rows, cols) tile after (sublane, lane) padding."""
    dt = np.dtype(dtype)
    return _sub_pad(rows, dt.itemsize) * _round_up(cols, 128) * dt.itemsize


def _vmem_budget_bytes():
    """Per-core VMEM budget for the pipelined tiles.  Derived from physical
    capacity when queryable (v5e/v6e: 128 MiB, v7x: 64 MiB per TensorCore)
    and capped so the explicit vmem_limit below fits every generation."""
    try:
        phys = int(pltpu.get_tpu_info().vmem_capacity_bytes)
    except Exception:
        phys = 64 << 20                      # v7x per-TC VMEM: most conservative
    return min(phys // 2, 24 << 20)


# Only split the grid for megacore balance if each step still moves this much.
_MIN_STEP_BYTES = 256 << 10


# ----------------------------------------------------------------------------
# kernels
# ----------------------------------------------------------------------------
def _store_pose_and_act(o_ref, y, pose_dim):
    """Two direct stores instead of a concatenate (no extra (tm, C) VMEM copy).

    y: (rows, C) float32 pre-activation; o_ref: (rows, C) output block.
    Pose columns [:pose_dim] stay linear, activation columns get sigmoid."""
    if pose_dim % 128 == 0:
        # Lane-aligned boundary (default config: pose_dim = B*P*P = 128):
        # pose store is an unmasked vst; only the tiny activation tail is a
        # masked store; sigmoid (EUP) runs only on the B activation columns.
        o_ref[:, :pose_dim] = y[:, :pose_dim].astype(o_ref.dtype)
        o_ref[:, pose_dim:] = jax.nn.sigmoid(y[:, pose_dim:]).astype(o_ref.dtype)
    else:
        # Unaligned boundary: whole 128-lane pose tiles stay plain stores;
        # iota/where + sigmoid only on the tile that contains the boundary.
        lo = (pose_dim // 128) * 128
        if lo > 0:
            o_ref[:, :lo] = y[:, :lo].astype(o_ref.dtype)
        tail = y[:, lo:]
        col = jax.lax.broadcasted_iota(jnp.int32, tail.shape, 1) + lo
        o_ref[:, lo:] = jnp.where(col < pose_dim, tail,
                                  jax.nn.sigmoid(tail)).astype(o_ref.dtype)


def _pc_1x1_kernel(x_ref, w_ref, b_ref, o_ref, *, pose_dim):
    """K==1 fast path.
    x_ref: (A, t_hw) channel-major slab straight from the NCHW input,
    w_ref: (A, C), b_ref: (1, C) f32, o_ref: (t_hw, C).
    The channels-last transpose happens here in VMEM (XLU) — essentially free
    next to the HBM-bound output write — instead of a wrapper-side HBM pass."""
    xt = x_ref[...].T                                          # (t_hw, A)
    y = jnp.dot(xt, w_ref[...], preferred_element_type=jnp.float32)
    y = y + b_ref[...]
    _store_pose_and_act(o_ref, y, pose_dim)


def _pc_rows_kernel(x_ref, w_ref, b_ref, o_ref, *, pose_dim):
    """General (K>1) path: row tile of im2col patches.
    x_ref: (tm, Kin), w_ref: (Kin, C), b_ref: (1, C) f32, o_ref: (tm, C)."""
    y = jnp.dot(x_ref[...], w_ref[...], preferred_element_type=jnp.float32)
    y = y + b_ref[...]
    _store_pose_and_act(o_ref, y, pose_dim)


# ----------------------------------------------------------------------------
# tile selection (lane-padded VMEM math, even-grid preference for v7x)
# ----------------------------------------------------------------------------
def _choose_thw(HW, n_batch, bytes_per_hw, budget, max_thw=8192):
    """Spatial tile for the K==1 path: multiple of 128 (lane dim of the input
    slab / sublane dim of the output block) or the full HW extent."""
    if HW <= 128:
        return HW
    cap = min(max_thw, budget // max(1, bytes_per_hw))
    cap = max(128, (cap // 128) * 128)
    steps = _cdiv(HW, cap)
    # Even total step count keeps v7x's two TensorCores balanced — but only
    # split further when each step still moves enough HBM traffic to hide the
    # ~0.35us per-step overhead.
    if (n_batch * steps) % 2 == 1 and HW * bytes_per_hw >= (steps + 1) * _MIN_STEP_BYTES:
        steps += 1
    if steps == 1:
        return HW
    return max(128, min(cap, _round_up(_cdiv(HW, steps), 128)))


def _choose_tm(M, bytes_per_row, budget, row_align, max_tm=4096):
    """Row tile for the general path: as large as the lane-padded,
    double-buffered VMEM budget allows, preferring an even number of steps."""
    cap = min(max_tm, budget // max(1, bytes_per_row))
    cap = max(row_align, (cap // row_align) * row_align)
    steps = _cdiv(M, cap)
    if steps % 2 == 1 and M * bytes_per_row >= (steps + 1) * _MIN_STEP_BYTES:
        steps += 1
    tm = _round_up(_cdiv(M, steps), row_align)
    return min(tm, cap)


# ----------------------------------------------------------------------------
# pallas_call wrappers
# ----------------------------------------------------------------------------
def _primary_caps_1x1(x3, w, b, pose_dim, out_dtype):
    """x3: (N, A, HW) NCHW-flattened input, w: (A, C), b: (1, C) f32."""
    N, A, HW = x3.shape
    C = w.shape[1]
    itx = x3.dtype.itemsize
    ito = np.dtype(out_dtype).itemsize

    budget = _vmem_budget_bytes()
    const = 2 * _tile_bytes(A, C, w.dtype) + 2 * _tile_bytes(1, C, b.dtype)
    bytes_per_hw = 2 * (_sub_pad(A, itx) * itx + _round_up(C, 128) * ito)
    t_hw = _choose_thw(HW, N, bytes_per_hw, max(budget - const, 1 << 20))

    footprint = const + 2 * (_sub_pad(A, itx) * _round_up(t_hw, 128) * itx
                             + _sub_pad(t_hw, ito) * _round_up(C, 128) * ito)
    vmem_limit = int(max(footprint + (4 << 20), 32 << 20))

    n_act = C - pose_dim if pose_dim % 128 == 0 else C - (pose_dim // 128) * 128
    cost = pl.CostEstimate(
        flops=int(2 * N * HW * A * C),
        transcendentals=int(N * HW * n_act),
        bytes_accessed=int(x3.size * itx + w.size * w.dtype.itemsize
                           + b.size * 4 + N * HW * C * ito))

    kernel = functools.partial(_pc_1x1_kernel, pose_dim=pose_dim)
    return pl.pallas_call(
        kernel,
        out_shape=jax.ShapeDtypeStruct((N, HW, C), out_dtype),
        grid_spec=pltpu.PrefetchScalarGridSpec(
            num_scalar_prefetch=0,
            grid=(N, _cdiv(HW, t_hw)),
            in_specs=[
                pl.BlockSpec((None, A, t_hw), lambda n, j: (n, 0, j)),  # x slab
                pl.BlockSpec((A, C), lambda n, j: (0, 0)),              # weights
                pl.BlockSpec((1, C), lambda n, j: (0, 0)),              # bias
            ],
            out_specs=pl.BlockSpec((None, t_hw, C), lambda n, j: (n, j, 0)),
        ),
        compiler_params=pltpu.CompilerParams(
            dimension_semantics=("parallel", "parallel"),
            vmem_limit_bytes=vmem_limit),
        cost_estimate=cost,
    )(x3, w, b)


def _primary_caps_rows(x2d, w, b, pose_dim, out_dtype):
    """x2d: (M, Kin) im2col patches, w: (Kin, C), b: (1, C) f32."""
    M, Kin = x2d.shape
    C = w.shape[1]
    itx = x2d.dtype.itemsize
    ito = np.dtype(out_dtype).itemsize
    row_align = 16 if min(itx, ito) < 4 else 8

    budget = _vmem_budget_bytes()
    const = 2 * _tile_bytes(Kin, C, w.dtype) + 2 * _tile_bytes(1, C, b.dtype)
    bytes_per_row = 2 * (_round_up(Kin, 128) * itx + _round_up(C, 128) * ito)
    tm = _choose_tm(M, bytes_per_row, max(budget - const, 1 << 20), row_align)

    footprint = const + _sub_pad(tm, min(itx, ito)) * bytes_per_row
    vmem_limit = int(max(footprint + (4 << 20), 32 << 20))

    n_act = C - pose_dim if pose_dim % 128 == 0 else C - (pose_dim // 128) * 128
    cost = pl.CostEstimate(
        flops=int(2 * M * Kin * C),
        transcendentals=int(M * n_act),
        bytes_accessed=int(x2d.size * itx + w.size * w.dtype.itemsize
                           + b.size * 4 + M * C * ito))

    kernel = functools.partial(_pc_rows_kernel, pose_dim=pose_dim)
    return pl.pallas_call(
        kernel,
        out_shape=jax.ShapeDtypeStruct((M, C), out_dtype),
        grid_spec=pltpu.PrefetchScalarGridSpec(
            num_scalar_prefetch=0,
            grid=(_cdiv(M, tm),),          # ragged last block handled by pipeline
            in_specs=[
                pl.BlockSpec((tm, Kin), lambda i: (i, 0)),
                pl.BlockSpec((Kin, C), lambda i: (0, 0)),
                pl.BlockSpec((1, C), lambda i: (0, 0)),
            ],
            out_specs=pl.BlockSpec((tm, C), lambda i: (i, 0)),
        ),
        compiler_params=pltpu.CompilerParams(
            dimension_semantics=("parallel",),
            vmem_limit_bytes=vmem_limit),
        cost_estimate=cost,
    )(x2d, w, b)


# ----------------------------------------------------------------------------
# Wrapper reproducing PrimaryCaps.forward semantics
# ----------------------------------------------------------------------------
def primary_caps_forward(x, w_pose, b_pose, w_a, b_a, *, K, stride, P, B,
                         compute_dtype=jnp.float32, out_dtype=None):
    """x: (N, A, H, W) NCHW.  w_pose: (B*P*P, A, K, K), w_a: (B, A, K, K).
    Returns (N, H', W', B*P*P + B): pose columns first, sigmoid(activation)
    columns last — matching torch.cat([pose, a], 1).permute(0, 2, 3, 1).

    compute_dtype controls the weight / patch dtype fed to the MXU; out_dtype
    (default: compute_dtype) controls the kernel's output store.  bfloat16
    halves the dominant HBM cost (the wide output write) while accumulation
    stays float32; the float32 default reproduces the PyTorch numerics."""
    N, A, H, W = x.shape
    Ho = (H - K) // stride + 1
    Wo = (W - K) // stride + 1
    pose_dim = B * P * P
    C = pose_dim + B
    out_dtype = np.dtype(compute_dtype if out_dtype is None else out_dtype)
    compute_dtype = np.dtype(compute_dtype)

    # Conv weights (O, A, K, K) -> matmul weights (K*K*A, O), (di, dj, a)
    # column order; pose and activation filters concatenated so one fused
    # matmul produces the whole output row.
    def to_mat(wc):
        return wc.transpose(2, 3, 1, 0).reshape(K * K * A, wc.shape[0])

    w_comb = jnp.concatenate([to_mat(w_pose), to_mat(w_a)], axis=1)
    w_comb = w_comb.astype(compute_dtype)
    b_comb = jnp.concatenate([b_pose, b_a], axis=0).astype(jnp.float32)
    b_comb = b_comb.reshape(1, C)

    if K == 1:
        # 1x1 conv: feed NCHW directly as (N, A, H'*W') slabs.  The
        # channels-last transpose is done per-tile inside the kernel, so no
        # wrapper-side transpose/im2col HBM round trip.
        xs = x if stride == 1 else x[:, :, :stride * Ho:stride, :stride * Wo:stride]
        if stride != 1:
            xs = xs.astype(compute_dtype)      # strided copy materializes anyway
        x3 = xs.reshape(N, A, Ho * Wo)
        out = _primary_caps_1x1(x3, w_comb, b_comb, pose_dim, out_dtype)
        return out.reshape(N, Ho, Wo, C)

    # K > 1: materialized im2col patches feeding the row-tiled kernel.
    # TODO(synk): fuse the KxK taps into the kernel (trailing "arbitrary" grid
    # axis over (di, dj) with an f32 VMEM accumulator) to avoid the ~K^2
    # input-traffic inflation of materialized patches.
    taps = []
    for di in range(K):
        for dj in range(K):
            taps.append(x[:, :, di:di + stride * Ho:stride,
                          dj:dj + stride * Wo:stride])
    p = jnp.stack(taps, axis=0)                          # (K*K, N, A, Ho, Wo)
    p = p.transpose(1, 3, 4, 0, 2).reshape(N * Ho * Wo, K * K * A)
    out2d = _primary_caps_rows(p.astype(compute_dtype), w_comb, b_comb,
                               pose_dim, out_dtype)
    return out2d.reshape(N, Ho, Wo, C)


# ----------------------------------------------------------------------------
# Pure-JAX reference (correctness check)
# ----------------------------------------------------------------------------
def primary_caps_reference(x, w_pose, b_pose, w_a, b_a, *, K, stride):
    dn = ("NCHW", "OIHW", "NCHW")
    pose = jax.lax.conv_general_dilated(
        x, w_pose, (stride, stride), "VALID", dimension_numbers=dn)
    pose = pose + b_pose[None, :, None, None]
    a = jax.lax.conv_general_dilated(
        x, w_a, (stride, stride), "VALID", dimension_numbers=dn)
    a = jax.nn.sigmoid(a + b_a[None, :, None, None])
    return jnp.concatenate([pose, a], axis=1).transpose(0, 2, 3, 1)


if __name__ == "__main__":
    key = jax.random.PRNGKey(0)
    (kx, kwp, kbp, kwa, kba,
     kx2, kwp2, kbp2, kwa2, kba2) = jax.random.split(key, 10)

    # --- config 1: module defaults K=1, stride=1 (1x1-conv fast path) -------
    N, A, H, W = 2, 16, 16, 16
    B, P, K, stride = 8, 4, 1, 1
    bound = 1.0 / math.sqrt(A * K * K)
    x = jax.random.normal(kx, (N, A, H, W), dtype=jnp.float32)
    w_pose = jax.random.uniform(kwp, (B * P * P, A, K, K), jnp.float32, -bound, bound)
    b_pose = jax.random.uniform(kbp, (B * P * P,), jnp.float32, -bound, bound)
    w_a = jax.random.uniform(kwa, (B, A, K, K), jnp.float32, -bound, bound)
    b_a = jax.random.uniform(kba, (B,), jnp.float32, -bound, bound)

    out = jax.block_until_ready(
        primary_caps_forward(x, w_pose, b_pose, w_a, b_a,
                             K=K, stride=stride, P=P, B=B))
    ref = primary_caps_reference(x, w_pose, b_pose, w_a, b_a, K=K, stride=stride)
    assert out.shape == (N, H, W, B * P * P + B), out.shape
    assert jnp.allclose(out, ref, atol=1e-4, rtol=1e-4), \
        float(jnp.max(jnp.abs(out - ref)))

    # bf16 variant: halves the dominant output HBM write (main perf lever);
    # accumulation stays f32, numerics deliberately looser than PyTorch f32.
    out_bf16 = jax.block_until_ready(
        primary_caps_forward(x, w_pose, b_pose, w_a, b_a, K=K, stride=stride,
                             P=P, B=B, compute_dtype=jnp.bfloat16))
    assert out_bf16.dtype == jnp.bfloat16
    assert float(jnp.max(jnp.abs(out_bf16.astype(jnp.float32) - ref))) < 1e-1

    # --- config 2: K=3, stride=2 (im2col + row-tiled kernel, exercises the
    #     unaligned pose/activation boundary fallback) -----------------------
    N2, A2, H2, W2 = 2, 8, 14, 14
    B2, P2, K2, s2 = 4, 4, 3, 2
    bound2 = 1.0 / math.sqrt(A2 * K2 * K2)
    x2 = jax.random.normal(kx2, (N2, A2, H2, W2), dtype=jnp.float32)
    w_pose2 = jax.random.uniform(kwp2, (B2 * P2 * P2, A2, K2, K2),
                                 jnp.float32, -bound2, bound2)
    b_pose2 = jax.random.uniform(kbp2, (B2 * P2 * P2,), jnp.float32, -bound2, bound2)
    w_a2 = jax.random.uniform(kwa2, (B2, A2, K2, K2), jnp.float32, -bound2, bound2)
    b_a2 = jax.random.uniform(kba2, (B2,), jnp.float32, -bound2, bound2)

    out2 = jax.block_until_ready(
        primary_caps_forward(x2, w_pose2, b_pose2, w_a2, b_a2,
                             K=K2, stride=s2, P=P2, B=B2))
    ref2 = primary_caps_reference(x2, w_pose2, b_pose2, w_a2, b_a2, K=K2, stride=s2)
    Ho2 = (H2 - K2) // s2 + 1
    assert out2.shape == (N2, Ho2, Ho2, B2 * P2 * P2 + B2), out2.shape
    assert jnp.allclose(out2, ref2, atol=1e-4, rtol=1e-4), \
        float(jnp.max(jnp.abs(out2 - ref2)))

    print("KERNEL_OK")
</pallas_src>

<mosaic_0001>
module attributes {stable_mosaic.version = 11 : i64} {
  func.func @_pc_1x1_kernel(%arg0: i32, %arg1: i32, %arg2: memref<1x16x256xf32, #tpu.memory_space<vmem>>, %arg3: memref<16x136xf32, #tpu.memory_space<vmem>>, %arg4: memref<1x136xf32, #tpu.memory_space<vmem>>, %arg5: memref<1x256x136xf32, #tpu.memory_space<vmem>>) attributes {dimension_semantics = [#tpu.dimension_semantics<parallel>, #tpu.dimension_semantics<parallel>], iteration_bounds = array<i64: 2, 1>, scalar_prefetch = 0 : i64, scratch_operands = 0 : i64, tpu.core_type = #tpu.core_type<tc>, window_params = [{transform_indices = @transform_0, window_bounds = array<i64: 1, 16, 256>}, {pipeline_mode = #tpu.pipeline_mode<synchronous>, transform_indices = @transform_1, window_bounds = array<i64: 16, 136>}, {pipeline_mode = #tpu.pipeline_mode<synchronous>, transform_indices = @transform_2, window_bounds = array<i64: 1, 136>}, {transform_indices = @transform_3, window_bounds = array<i64: 1, 256, 136>}]} {
    %c0 = arith.constant 0 : index
    %c0_0 = arith.constant 0 : index
    %c0_1 = arith.constant 0 : index
    %0 = vector.load %arg2[%c0, %c0_0, %c0_1] : memref<1x16x256xf32, #tpu.memory_space<vmem>>, vector<1x16x256xf32>
    %1 = vector.shape_cast %0 : vector<1x16x256xf32> to vector<16x256xf32>
    %2 = tpu.transpose %1, [1, 0] : vector<16x256xf32> -> vector<256x16xf32>
    %c0_2 = arith.constant 0 : index
    %c0_3 = arith.constant 0 : index
    %3 = vector.load %arg3[%c0_2, %c0_3] : memref<16x136xf32, #tpu.memory_space<vmem>>, vector<16x136xf32>
    %cst = arith.constant dense<0.000000e+00> : vector<256x136xf32>
    %4 = tpu.matmul %2, %3, %cst {dimension_numbers = #tpu.dot_dimension_numbers<[1], [0], [0], [1], [0, 0, 1, 1], [], []>} : vector<256x16xf32>, vector<16x136xf32>, vector<256x136xf32> -> vector<256x136xf32>
    %c0_4 = arith.constant 0 : index
    %c0_5 = arith.constant 0 : index
    %5 = vector.load %arg4[%c0_4, %c0_5] : memref<1x136xf32, #tpu.memory_space<vmem>>, vector<1x136xf32>
    %6 = vector.broadcast %5 : vector<1x136xf32> to vector<256x136xf32>
    %7 = arith.addf %4, %6 : vector<256x136xf32>
    %8 = vector.extract_strided_slice %7 {offsets = [0, 0], sizes = [256, 128], strides = [1, 1]} : vector<256x136xf32> to vector<256x128xf32>
    %c0_6 = arith.constant 0 : index
    %c0_7 = arith.constant 0 : index
    %c0_8 = arith.constant 0 : index
    %9 = vector.load %arg5[%c0_6, %c0_7, %c0_8] : memref<1x256x136xf32, #tpu.memory_space<vmem>>, vector<1x256x128xf32>
    %10 = vector.shape_cast %9 : vector<1x256x128xf32> to vector<256x128xf32>
    %11 = vector.shape_cast %8 : vector<256x128xf32> to vector<1x256x128xf32>
    tpu.vector_store %arg5[%c0_6, %c0_7, %c0_8], %11 {strides = array<i32>} : memref<1x256x136xf32, #tpu.memory_space<vmem>>, vector<1x256x128xf32>,
    %12 = vector.extract_strided_slice %7 {offsets = [0, 128], sizes = [256, 8], strides = [1, 1]} : vector<256x136xf32> to vector<256x8xf32>
    %13 = arith.negf %12 : vector<256x8xf32>
    %14 = math.exp %13 : vector<256x8xf32>
    %cst_9 = arith.constant 1.000000e+00 : f32
    %15 = vector.broadcast %cst_9 : f32 to vector<256x8xf32>
    %16 = arith.addf %15, %14 : vector<256x8xf32>
    %17 = arith.divf %15, %16 : vector<256x8xf32>
    %c0_10 = arith.constant 0 : index
    %c0_11 = arith.constant 0 : index
    %c128 = arith.constant 128 : index
    %18 = vector.load %arg5[%c0_10, %c0_11, %c128] : memref<1x256x136xf32, #tpu.memory_space<vmem>>, vector<1x256x8xf32>
    %19 = vector.shape_cast %18 : vector<1x256x8xf32> to vector<256x8xf32>
    %20 = vector.shape_cast %17 : vector<256x8xf32> to vector<1x256x8xf32>
    tpu.vector_store %arg5[%c0_10, %c0_11, %c128], %20 {strides = array<i32>} : memref<1x256x136xf32, #tpu.memory_space<vmem>>, vector<1x256x8xf32>,
    return
  }
  func.func @transform_0(%arg0: i32, %arg1: i32) -> (i32, i32, i32) {
    %c0_i32 = arith.constant 0 : i32
    %c0_i32_0 = arith.constant 0 : i32
    return %arg0, %c0_i32, %arg1 : i32, i32, i32
  }
  func.func @transform_1(%arg0: i32, %arg1: i32) -> (i32, i32) {
    %c0_i32 = arith.constant 0 : i32
    %c0_i32_0 = arith.constant 0 : i32
    %c0_i32_1 = arith.constant 0 : i32
    return %c0_i32, %c0_i32_0 : i32, i32
  }
  func.func @transform_2(%arg0: i32, %arg1: i32) -> (i32, i32) {
    %c0_i32 = arith.constant 0 : i32
    %c0_i32_0 = arith.constant 0 : i32
    %c0_i32_1 = arith.constant 0 : i32
    return %c0_i32, %c0_i32_0 : i32, i32
  }
  func.func @transform_3(%arg0: i32, %arg1: i32) -> (i32, i32, i32) {
    %c0_i32 = arith.constant 0 : i32
    %c0_i32_0 = arith.constant 0 : i32
    return %arg0, %arg1, %c0_i32 : i32, i32, i32
  }
}

</mosaic_0001>

<llo_original>
// kernel: tpu_custom_call.1
$region0: #{tpu_custom_call.1}
  #allocation0 [shape = 'u32[]', space=smem, size = 0x4, offset = 0x4, fixed_abs, tag = 'smem constant byte address 0x4 - core index']
  #allocation1 [shape = 'u32[144,128]{1,0:T(1,128)}', space=vmem, size = 0x12000, scoped, tag = 'internal scratch']
  %s0 = inlined_call_operand.hbm [shape: f32[2,16,256], index: 0, kind: input, shape index: {}]
  %s1 = inlined_call_operand.hbm [shape: f32[16,136], index: 1, kind: input, shape index: {}]
  %s2 = inlined_call_operand.vmem [shape: f32[1,136], index: 2, kind: input, shape index: {}]
  %s3 = inlined_call_operand.vmem [shape: f32[2,256,136], index: 3, kind: output, shape index: {}]
  %s4 = sld [smem:[#allocation0]]
  $region53: #{tpu_custom_call.1} parent=0
    _
  %s6 = ssub.s32 1, %s4
  %s7 = scalar_select 0, %s6, %s4
  $region1: #{tpu_custom_call.1} parent=0
    #allocation2 [shape = 'u8[32768]{0}', space=vmem, size = 0x8000, scoped, tag = 'input window, operand 0']
    #allocation3 [shape = 's32[2]{0}', space=sflag, size = 0x8, scoped, tag = 'scoped memory for tpu_custom_call.1']
    #allocation4 [shape = 'u8[16384]{0}', space=vmem, size = 0x4000, scoped, tag = 'input window, operand 1, single buffered']
    #allocation5 [shape = 's32[1]{0}', space=sflag, size = 0x4, scoped, tag = 'scoped memory for tpu_custom_call.1']
    %8 = vsyncpa [#allocation3], 0
    %s9 = scalar_lea.sflag [#allocation3], 1
    %10 = vsyncpa %s9, 0
    %11 = vsyncpa [#allocation5], 0
    loop: start=0, step=1, limit=4
    $region2: #{tpu_custom_call.1} parent=1 // loop_pre_header
      _
    $region3: #{tpu_custom_call.1} parent=1 // loop_header
      %s13 = sphi 0, %s17
      %p14 = scmp.ge.s32.totalorder %s13, 4
      %s20 = sphi 0, %s32
      %s21 = sphi 0, %s28
      %s22 = sphi 0, %s20
      %s23 = sphi 0, %s21
      %s24 = sphi 0, %s22
      %s25 = sphi 0, %s23
      %s37 = sphi 0, %s39
      %s40 = sphi 0, %s37
      %s41 = sphi 0, %s40
      %s57 = sphi 0, %s41
      %s61 = sphi 0, %s61
      %s63 = sphi 0, %s61
      %s64 = sphi 0, %s63
      %s78 = sphi 0, %s64
      %s82 = sphi 0, %s82
      %s84 = sphi 0, %s82
      %s85 = sphi 0, %s84
      %s99 = sphi 0, %s85
      %s107 = sphi 0, %s109
      %s110 = sphi 0, %s107
      %s111 = sphi 0, %s110
      %s127 = sphi 0, %s111
    $region4: #{tpu_custom_call.1} parent=1 // loop_header_branch
      %16 = sbr.rel (%p14) target = $region8
    $region5: #{tpu_custom_call.1} parent=1 // loop_body
      %s18 = ssub.s32 %s13, 1
      %s19 = ssub.s32 %s13, 2
      %s26 = sadd.s32 1, %s21
      %p27 = scmp.ge.s32.totalorder %s26, 1
      %s28 = scalar_select %p27, 0, %s26
      %s29 = sadd.s32 1, %s20
      %s30 = scalar_select %p27, %s29, %s20
      %p31 = scmp.ge.s32.totalorder %s30, 2
      %s32 = scalar_select %p31, 0, %s30
      %s33 = ssub.s32 %s20, %s32
      %s34 = ssub.s32 %s21, %s28
      %s35 = sor.u32 %s33, %s34
      %p36 = scmp.eq.s32.totalorder %s35, 0
      %s38 = sadd.s32 %s37, 1
      %s39 = scalar_select %p36, %s37, %s38
      %p42 = pneg %p36
      %p43 = scmp.eq.s32.totalorder %s13, 1
      %p44 = por %p42, %p43
      %p45 = scmp.ne.s32.totalorder %s37, %s40
      %p46 = scmp.eq.s32.totalorder %s13, 0
      %p47 = por %p45, %p46
      %p48 = scmp.ne.s32.totalorder %s37, %s40
      %p49 = scmp.eq.s32.totalorder %s18, 1
      %p50 = por %p48, %p49
      %p51 = scmp.ne.s32.totalorder %s40, %s41
      %p52 = scmp.eq.s32.totalorder %s18, 0
      %p53 = por %p51, %p52
      %p54 = scmp.ne.s32.totalorder %s40, %s41
      %p55 = scmp.eq.s32.totalorder %s19, 1
      %p56 = por %p54, %p55
      %p58 = scmp.ne.s32.totalorder %s41, %s57
      %p59 = scmp.eq.s32.totalorder %s19, 0
      %p60 = por %p58, %p59
      %s62 = sadd.s32 %s61, 1
      %p65 = scmp.eq.s32.totalorder %s13, 1
      %p66 = scmp.ne.s32.totalorder %s61, %s63
      %p67 = scmp.eq.s32.totalorder %s13, 0
      %p68 = por %p66, %p67
      %p69 = scmp.ne.s32.totalorder %s61, %s63
      %p70 = scmp.eq.s32.totalorder %s18, 1
      %p71 = por %p69, %p70
      %p72 = scmp.ne.s32.totalorder %s63, %s64
      %p73 = scmp.eq.s32.totalorder %s18, 0
      %p74 = por %p72, %p73
      %p75 = scmp.ne.s32.totalorder %s63, %s64
      %p76 = scmp.eq.s32.totalorder %s19, 1
      %p77 = por %p75, %p76
      %p79 = scmp.ne.s32.totalorder %s64, %s78
      %p80 = scmp.eq.s32.totalorder %s19, 0
      %p81 = por %p79, %p80
      %s83 = sadd.s32 %s82, 1
      %p86 = scmp.eq.s32.totalorder %s13, 1
      %p87 = scmp.ne.s32.totalorder %s82, %s84
      %p88 = scmp.eq.s32.totalorder %s13, 0
      %p89 = por %p87, %p88
      %p90 = scmp.ne.s32.totalorder %s82, %s84
      %p91 = scmp.eq.s32.totalorder %s18, 1
      %p92 = por %p90, %p91
      %p93 = scmp.ne.s32.totalorder %s84, %s85
      %p94 = scmp.eq.s32.totalorder %s18, 0
      %p95 = por %p93, %p94
      %p96 = scmp.ne.s32.totalorder %s84, %s85
      %p97 = scmp.eq.s32.totalorder %s19, 1
      %p98 = por %p96, %p97
      %p100 = scmp.ne.s32.totalorder %s85, %s99
      %p101 = scmp.eq.s32.totalorder %s19, 0
      %p102 = por %p100, %p101
      %s103 = ssub.s32 %s20, %s32
      %s104 = ssub.s32 %s21, %s28
      %s105 = sor.u32 %s103, %s104
      %p106 = scmp.eq.s32.totalorder %s105, 0
      %s108 = sadd.s32 %s107, 1
      %s109 = scalar_select %p106, %s107, %s108
      %p112 = pneg %p106
      %p113 = scmp.eq.s32.totalorder %s13, 1
      %p114 = por %p112, %p113
      %p115 = scmp.ne.s32.totalorder %s107, %s110
      %p116 = scmp.eq.s32.totalorder %s13, 0
      %p117 = por %p115, %p116
      %p118 = scmp.ne.s32.totalorder %s107, %s110
      %p119 = scmp.eq.s32.totalorder %s18, 1
      %p120 = por %p118, %p119
      %p121 = scmp.ne.s32.totalorder %s110, %s111
      %p122 = scmp.eq.s32.totalorder %s18, 0
      %p123 = por %p121, %p122
      %p124 = scmp.ne.s32.totalorder %s110, %s111
      %p125 = scmp.eq.s32.totalorder %s19, 1
      %p126 = por %p124, %p125
      %p128 = scmp.ne.s32.totalorder %s111, %s127
      %p129 = scmp.eq.s32.totalorder %s19, 0
      %p130 = por %p128, %p129
      %p131 = scmp.le.s32.totalorder 1, %s13
      %p132 = scmp.lt.s32.totalorder %s13, 3
      %p133 = pnand %p131, %p132
      %p134 = pneg %p133
      // Predicated region
      $region9: #{tpu_custom_call.1} parent=5 // pred_check
        _
      $region10: #{tpu_custom_call.1} parent=5 // pred_check_branch
        %136 = sbr.rel (%p133) target = $region12
      $region11: #{tpu_custom_call.1} parent=5 // pred_region
        %s137 = ssub.s32 %s13, 1
        // Predicated region
        $region13: #{tpu_custom_call.1} parent=11 // pred_check
          %p138 = pneg %p74
        $region14: #{tpu_custom_call.1} parent=11 // pred_check_branch
          %140 = sbr.rel (%p138) target = $region16
        $region15: #{tpu_custom_call.1} parent=11 // pred_region
          %s142 = ssub.s32 512, 512
          %143 = vsyncadd [#allocation5], %s142
          %s144 = sshll.u32 [#allocation4], 4
          %s145 = int_to_ptr.vmem [resolvable:$true] %s144
          %150 = dma.hbm_to_vmem [thread:$0]  %s1, 512, %s145, [#allocation5], 256, 256, 16
        $region16: #{tpu_custom_call.1} parent=11 // pred_fallthru
          _
        // Predicated region
        $region17: #{tpu_custom_call.1} parent=11 // pred_check
          %p151 = pneg %p95
        $region18: #{tpu_custom_call.1} parent=11 // pred_check_branch
          %153 = sbr.rel (%p151) target = $region20
        $region19: #{tpu_custom_call.1} parent=11 // pred_region
          _
        $region20: #{tpu_custom_call.1} parent=11 // pred_fallthru
          _
      $region12: #{tpu_custom_call.1} parent=5 // pred_fallthru
        _
      %p154 = scmp.lt.s32.totalorder %s13, 2
      // Predicated region
      $region21: #{tpu_custom_call.1} parent=5 // pred_check
        %p155 = pneg %p154
      $region22: #{tpu_custom_call.1} parent=5 // pred_check_branch
        %157 = sbr.rel (%p155) target = $region24
      $region23: #{tpu_custom_call.1} parent=5 // pred_region
        // Predicated region
        $region25: #{tpu_custom_call.1} parent=23 // pred_check
          %p158 = pneg %p47
        $region26: #{tpu_custom_call.1} parent=23 // pred_check_branch
          %160 = sbr.rel (%p158) target = $region28
        $region27: #{tpu_custom_call.1} parent=23 // pred_region
          %s161 = sand.u32 %s37, 1
          %s162 = scalar_lea.sflag [#allocation3], %s161
          %s163 = sand.u32 %s37, 1
          %s164 = smul.addr %s163, 32
          %s165 = scalar_lea.vmem [#allocation2], %s164
          %s166 = smul.u32 2, %s21
          %s168 = ssub.s32 512, 512
          %169 = vsyncadd %s162, %s168
          %s170 = smul.addr %s20, 4
          %s171 = sadd.s32 %s166, %s170
          %s172 = smul.addr %s171, 128
          %s173 = scalar_lea.hbm %s0, %s172
          %s174 = sshll.u32 %s165, 4
          %s175 = int_to_ptr.vmem [resolvable:$true] %s174
          %180 = dma.hbm_to_vmem [thread:$0]  %s173, 512, %s175, %s162, 256, 256, 16
        $region28: #{tpu_custom_call.1} parent=23 // pred_fallthru
          _
      $region24: #{tpu_custom_call.1} parent=5 // pred_fallthru
        _
      %p181 = scmp.le.s32.totalorder 1, %s13
      %p182 = scmp.lt.s32.totalorder %s13, 3
      %p183 = pnand %p181, %p182
      %p184 = pneg %p183
      // Predicated region
      $region29: #{tpu_custom_call.1} parent=5 // pred_check
        _
      $region30: #{tpu_custom_call.1} parent=5 // pred_check_branch
        %186 = sbr.rel (%p183) target = $region32
      $region31: #{tpu_custom_call.1} parent=5 // pred_region
        %s187 = ssub.s32 %s13, 1
        %s188 = sand.u32 %s40, 1
        %s189 = scalar_lea.sflag [#allocation3], %s188
        %s190 = sand.u32 %s40, 1
        %s191 = smul.addr %s190, 32
        %s192 = scalar_lea.vmem [#allocation2], %s191
        // Predicated region
        $region33: #{tpu_custom_call.1} parent=31 // pred_check
          %p193 = pneg %p53
        $region34: #{tpu_custom_call.1} parent=31 // pred_check_branch
          %195 = sbr.rel (%p193) target = $region36
        $region35: #{tpu_custom_call.1} parent=31 // pred_region
          %196 = dma.done %s189, 512
        $region36: #{tpu_custom_call.1} parent=31 // pred_fallthru
          _
        // Predicated region
        $region37: #{tpu_custom_call.1} parent=31 // pred_check
          %p197 = pneg %p74
        $region38: #{tpu_custom_call.1} parent=31 // pred_check_branch
          %199 = sbr.rel (%p197) target = $region40
        $region39: #{tpu_custom_call.1} parent=31 // pred_region
          %200 = dma.done [#allocation5], 512
        $region40: #{tpu_custom_call.1} parent=31 // pred_fallthru
          _
        %s201 = sand.u32 %s40, 1
        %s202 = scalar_lea.sflag [#allocation3], %s201
        %s203 = sand.u32 %s40, 1
        %s204 = smul.addr %s203, 32
        %s205 = scalar_lea.vmem [#allocation2], %s204
        %p206 = pneg %p53
        %p207 = pneg %p50
        %p208 = pneg %p74
        %p209 = pneg %p71
        %p210 = pneg %p95
        %p211 = pneg %p92
        %p212 = pneg %p123
        %p213 = pneg %p120
        %s214 = smul.u32 32, %s23
        %p215 = scmp.lt.s32.totalorder %s22, 1
        %s216 = scalar_select %p215, %s22, 1
        %p217 = scmp.lt.s32.totalorder %s214, 31
        %s218 = scalar_select %p217, %s214, 31
        %s219 = smul.addr %s218, 2
        %s220 = smul.addr %s216, 64
        %s221 = sadd.s32 %s219, %s220
        %s222 = smul.addr %s221, 8
        %s223 = scalar_lea.vmem %s3, %s222
        %s224 = smul.u32 2, %s23
        %s225 = smul.u32 32, %s23
        %p226 = scmp.lt.s32.totalorder %s22, 1
        %s227 = scalar_select %p226, %s22, 1
        %p228 = scmp.lt.s32.totalorder %s225, 31
        %s229 = scalar_select %p228, %s225, 31
        %s230 = smul.addr %s229, 2
        %s231 = smul.addr %s227, 64
        %s232 = sadd.s32 %s230, %s231
        %s233 = smul.addr %s232, 8
        %s234 = scalar_lea.vmem %s3, %s233
        %s235 = smul.u32 32, %s23
        %v236 = vld [vmem:[%s192] sm:$0xff]
        %v237 = vld [vmem:[%s192 + $0x8] sm:$0xff]
        %v238 = vld [vmem:[%s192 + $0x10] sm:$0xff]
        %v239 = vld [vmem:[%s192 + $0x18] sm:$0xff]
        %240 = vxpose.xlu0.b32.start [1/16] %v236, 128
        %241 = vxpose.xlu0.b32.cont [2/16] %v238, 128
        %242 = vxpose.xlu0.b32.cont [3/16] 0.0, 128
        %243 = vxpose.xlu0.b32.cont [4/16] 0.0, 128
        %244 = vxpose.xlu0.b32.cont [5/16] 0.0, 128
        %245 = vxpose.xlu0.b32.cont [6/16] 0.0, 128
        %246 = vxpose.xlu0.b32.cont [7/16] 0.0, 128
        %247 = vxpose.xlu0.b32.cont [8/16] 0.0, 128
        %248 = vxpose.xlu0.b32.cont [9/16] 0.0, 128
        %249 = vxpose.xlu0.b32.cont [10/16] 0.0, 128
        %250 = vxpose.xlu0.b32.cont [11/16] 0.0, 128
        %251 = vxpose.xlu0.b32.cont [12/16] 0.0, 128
        %252 = vxpose.xlu0.b32.cont [13/16] 0.0, 128
        %253 = vxpose.xlu0.b32.cont [14/16] 0.0, 128
        %254 = vxpose.xlu0.b32.cont [15/16] 0.0, 128
        %255 = vxpose.xlu0.b32.end [16/16] 0.0, 128
        %v256 = vpop.trf.xlu0
        %v257 = vpop.trf.xlu0
        %v258 = vpop.trf.xlu0
        %v259 = vpop.trf.xlu0
        %v260 = vpop.trf.xlu0
        %v261 = vpop.trf.xlu0
        %v262 = vpop.trf.xlu0
        %v263 = vpop.trf.xlu0
        %v264 = vpop.trf.xlu0
        %v265 = vpop.trf.xlu0
        %v266 = vpop.trf.xlu0
        %v267 = vpop.trf.xlu0
        %v268 = vpop.trf.xlu0
        %v269 = vpop.trf.xlu0
        %v270 = vpop.trf.xlu0
        %v271 = vpop.trf.xlu0
        %272 = vxpose.xlu0.b32.start [1/16] %v237, 128
        %273 = vxpose.xlu0.b32.cont [2/16] %v239, 128
        %274 = vxpose.xlu0.b32.cont [3/16] 0.0, 128
        %275 = vxpose.xlu0.b32.cont [4/16] 0.0, 128
        %276 = vxpose.xlu0.b32.cont [5/16] 0.0, 128
        %277 = vxpose.xlu0.b32.cont [6/16] 0.0, 128
        %278 = vxpose.xlu0.b32.cont [7/16] 0.0, 128
        %279 = vxpose.xlu0.b32.cont [8/16] 0.0, 128
        %280 = vxpose.xlu0.b32.cont [9/16] 0.0, 128
        %281 = vxpose.xlu0.b32.cont [10/16] 0.0, 128
        %282 = vxpose.xlu0.b32.cont [11/16] 0.0, 128
        %283 = vxpose.xlu0.b32.cont [12/16] 0.0, 128
        %284 = vxpose.xlu0.b32.cont [13/16] 0.0, 128
        %285 = vxpose.xlu0.b32.cont [14/16] 0.0, 128
        %286 = vxpose.xlu0.b32.cont [15/16] 0.0, 128
        %287 = vxpose.xlu0.b32.end [16/16] 0.0, 128
        %v288 = vpop.trf.xlu0
        %v289 = vpop.trf.xlu0
        %v290 = vpop.trf.xlu0
        %v291 = vpop.trf.xlu0
        %v292 = vpop.trf.xlu0
        %v293 = vpop.trf.xlu0
        %v294 = vpop.trf.xlu0
        %v295 = vpop.trf.xlu0
        %v296 = vpop.trf.xlu0
        %v297 = vpop.trf.xlu0
        %v298 = vpop.trf.xlu0
        %v299 = vpop.trf.xlu0
        %v300 = vpop.trf.xlu0
        %v301 = vpop.trf.xlu0
        %v302 = vpop.trf.xlu0
        %v303 = vpop.trf.xlu0
        %v304 = vld [vmem:[#allocation4] sm:$0xff]
        %v305 = vld [vmem:[#allocation4 + $0x8] sm:$0xff]
        %v306 = vld [vmem:[#allocation4 + $0x10] sm:$0xff]
        %v307 = vld [vmem:[#allocation4 + $0x18] sm:$0xff]
        %v308 = vld [vmem:[%s2] sm:$0x3]
        %v310 = vlaneseq
        %v311 = vshrl.u32 %v310, 7
        %v312 = vsub.s32 0, %v311
        %v313 = vrot.slane %v308, %v312
        %v314 = vlaneseq
        %v315 = vshrl.u32 %v314, 7
        %v316 = vsub.s32 1, %v315
        %v317 = vrot.slane %v308, %v316
        %vm320 = vcmask 130048
        %v322 = vsel %vm320, %v256, 0
        %v325 = vsel %vm320, %v257, 0
        %v328 = vsel %vm320, %v258, 0
        %v331 = vsel %vm320, %v259, 0
        %v334 = vsel %vm320, %v260, 0
        %v337 = vsel %vm320, %v261, 0
        %v340 = vsel %vm320, %v262, 0
        %v343 = vsel %vm320, %v263, 0
        %v346 = vsel %vm320, %v264, 0
        %v349 = vsel %vm320, %v265, 0
        %v352 = vsel %vm320, %v266, 0
        %v355 = vsel %vm320, %v267, 0
        %v358 = vsel %vm320, %v268, 0
        %v361 = vsel %vm320, %v269, 0
        %v364 = vsel %vm320, %v270, 0
        %v367 = vsel %vm320, %v271, 0
        %v370 = vsel %vm320, %v288, 0
        %v373 = vsel %vm320, %v289, 0
        %v376 = vsel %vm320, %v290, 0
        %v379 = vsel %vm320, %v291, 0
        %v382 = vsel %vm320, %v292, 0
        %v385 = vsel %vm320, %v293, 0
        %v388 = vsel %vm320, %v294, 0
        %v391 = vsel %vm320, %v295, 0
        %v394 = vsel %vm320, %v296, 0
        %v397 = vsel %vm320, %v297, 0
        %v400 = vsel %vm320, %v298, 0
        %v403 = vsel %vm320, %v299, 0
        %v406 = vsel %vm320, %v300, 0
        %v409 = vsel %vm320, %v301, 0
        %v412 = vsel %vm320, %v302, 0
        %v415 = vsel %vm320, %v303, 0
        %417 = vmatprep.subr.mxu0 %v305
        %418 = vmatpush1.msra.mxu0 %v304
        %419 = vmatprep.subr.mxu0 %v307
        %420 = vmatpush1.msra.mxu0 %v306
        %421 = vmatprep.subr.mxu0 0.0
        %422 = vmatpush1.msra.mxu0 0.0
        %423 = vmatprep.subr.mxu0 0.0
        %424 = vmatpush1.msra.mxu0 0.0
        %425 = vmatprep.subr.mxu0 0.0
        %426 = vmatpush1.msra.mxu0 0.0
        %427 = vmatprep.subr.mxu0 0.0
        %428 = vmatpush1.msra.mxu0 0.0
        %429 = vmatprep.subr.mxu0 0.0
        %430 = vmatpush1.msra.mxu0 0.0
        %431 = vmatprep.subr.mxu0 0.0
        %432 = vmatpush1.msra.mxu0 0.0
        %433 = vmatprep.subr.mxu0 0.0
        %434 = vmatpush1.msra.mxu0 0.0
        %435 = vmatprep.subr.mxu0 0.0
        %436 = vmatpush1.msra.mxu0 0.0
        %437 = vmatprep.subr.mxu0 0.0
        %438 = vmatpush1.msra.mxu0 0.0
        %439 = vmatprep.subr.mxu0 0.0
        %440 = vmatpush1.msra.mxu0 0.0
        %441 = vmatprep.subr.mxu0 0.0
        %442 = vmatpush1.msra.mxu0 0.0
        %443 = vmatprep.subr.mxu0 0.0
        %444 = vmatpush1.msra.mxu0 0.0
        %445 = vmatprep.subr.mxu0 0.0
        %446 = vmatpush1.msra.mxu0 0.0
        %447 = vmatprep.subr.mxu0 0.0
        %448 = vmatpush1.msra.mxu0 0.0
        %449 = vmatprep.subr.mxu0 0.0
        %450 = vmatpush1.msra.mxu0 0.0
        %451 = vmatprep.subr.mxu0 0.0
        %452 = vmatpush1.msra.mxu0 0.0
        %453 = vmatprep.subr.mxu0 0.0
        %454 = vmatpush1.msra.mxu0 0.0
        %455 = vmatprep.subr.mxu0 0.0
        %456 = vmatpush1.msra.mxu0 0.0
        %457 = vmatprep.subr.mxu0 0.0
        %458 = vmatpush1.msra.mxu0 0.0
        %459 = vmatprep.subr.mxu0 0.0
        %460 = vmatpush1.msra.mxu0 0.0
        %461 = vmatprep.subr.mxu0 0.0
        %462 = vmatpush1.msra.mxu0 0.0
        %463 = vmatprep.subr.mxu0 0.0
        %464 = vmatpush1.msra.mxu0 0.0
        %465 = vmatprep.subr.mxu0 0.0
        %466 = vmatpush1.msra.mxu0 0.0
        %467 = vmatprep.subr.mxu0 0.0
        %468 = vmatpush1.msra.mxu0 0.0
        %469 = vmatprep.subr.mxu0 0.0
        %470 = vmatpush1.msra.mxu0 0.0
        %471 = vmatprep.subr.mxu0 0.0
        %472 = vmatpush1.msra.mxu0 0.0
        %473 = vmatprep.subr.mxu0 0.0
        %474 = vmatpush1.msra.mxu0 0.0
        %475 = vmatprep.subr.mxu0 0.0
        %476 = vmatpush1.msra.mxu0 0.0
        %477 = vmatprep.subr.mxu0 0.0
        %478 = vmatpush1.msra.mxu0 0.0
        %479 = vmatprep.subr.mxu0 0.0
        %480 = vmatpush1.msra.mxu0 0.0
        %481 = vmatprep.mubr.f32.mxu0 0.0
        %482 = vmatmul.mubr.f32.gmra.mrb[0].mxu0 %v322
        %v483 = vpop.f32.mrb[0].mxu0
        %v484 = vadd.f32 %v313, %v483
        %v485 = vpop.f32.mrb[0].mxu0
        %v486 = vadd.f32 %v317, %v485
        %487 = vmatprep.mubr.f32.mxu0 0.0
        %488 = vmatmul.mubr.f32.gmra.mrb[0].mxu0 %v325
        %v489 = vpop.f32.mrb[0].mxu0
        %v490 = vadd.f32 %v313, %v489
        %v491 = vpop.f32.mrb[0].mxu0
        %v492 = vadd.f32 %v317, %v491
        %493 = vmatprep.mubr.f32.mxu0 0.0
        %494 = vmatmul.mubr.f32.gmra.mrb[0].mxu0 %v328
        %v495 = vpop.f32.mrb[0].mxu0
        %v496 = vadd.f32 %v313, %v495
        %v497 = vpop.f32.mrb[0].mxu0
        %v498 = vadd.f32 %v317, %v497
        %499 = vmatprep.mubr.f32.mxu0 0.0
        %500 = vmatmul.mubr.f32.gmra.mrb[0].mxu0 %v331
        %v501 = vpop.f32.mrb[0].mxu0
        %v502 = vadd.f32 %v313, %v501
        %v503 = vpop.f32.mrb[0].mxu0
        %v504 = vadd.f32 %v317, %v503
        %505 = vmatprep.mubr.f32.mxu0 0.0
        %506 = vmatmul.mubr.f32.gmra.mrb[0].mxu0 %v334
        %v507 = vpop.f32.mrb[0].mxu0
        %v508 = vadd.f32 %v313, %v507
        %v509 = vpop.f32.mrb[0].mxu0
        %v510 = vadd.f32 %v317, %v509
        %511 = vmatprep.mubr.f32.mxu0 0.0
        %512 = vmatmul.mubr.f32.gmra.mrb[0].mxu0 %v337
        %v513 = vpop.f32.mrb[0].mxu0
        %v514 = vadd.f32 %v313, %v513
        %v515 = vpop.f32.mrb[0].mxu0
        %v516 = vadd.f32 %v317, %v515
        %517 = vmatprep.mubr.f32.mxu0 0.0
        %518 = vmatmul.mubr.f32.gmra.mrb[0].mxu0 %v340
        %v519 = vpop.f32.mrb[0].mxu0
        %v520 = vadd.f32 %v313, %v519
        %v521 = vpop.f32.mrb[0].mxu0
        %v522 = vadd.f32 %v317, %v521
        %523 = vmatprep.mubr.f32.mxu0 0.0
        %524 = vmatmul.mubr.f32.gmra.mrb[0].mxu0 %v343
        %v525 = vpop.f32.mrb[0].mxu0
        %v526 = vadd.f32 %v313, %v525
        %v527 = vpop.f32.mrb[0].mxu0
        %v528 = vadd.f32 %v317, %v527
        %529 = vmatprep.mubr.f32.mxu0 0.0
        %530 = vmatmul.mubr.f32.gmra.mrb[0].mxu0 %v346
        %v531 = vpop.f32.mrb[0].mxu0
        %v532 = vadd.f32 %v313, %v531
        %v533 = vpop.f32.mrb[0].mxu0
        %v534 = vadd.f32 %v317, %v533
        %535 = vmatprep.mubr.f32.mxu0 0.0
        %536 = vmatmul.mubr.f32.gmra.mrb[0].mxu0 %v349
        %v537 = vpop.f32.mrb[0].mxu0
        %v538 = vadd.f32 %v313, %v537
        %v539 = vpop.f32.mrb[0].mxu0
        %v540 = vadd.f32 %v317, %v539
        %541 = vmatprep.mubr.f32.mxu0 0.0
        %542 = vmatmul.mubr.f32.gmra.mrb[0].mxu0 %v352
        %v543 = vpop.f32.mrb[0].mxu0
        %v544 = vadd.f32 %v313, %v543
        %v545 = vpop.f32.mrb[0].mxu0
        %v546 = vadd.f32 %v317, %v545
        %547 = vmatprep.mubr.f32.mxu0 0.0
        %548 = vmatmul.mubr.f32.gmra.mrb[0].mxu0 %v355
        %v549 = vpop.f32.mrb[0].mxu0
        %v550 = vadd.f32 %v313, %v549
        %v551 = vpop.f32.mrb[0].mxu0
        %v552 = vadd.f32 %v317, %v551
        %553 = vmatprep.mubr.f32.mxu0 0.0
        %554 = vmatmul.mubr.f32.gmra.mrb[0].mxu0 %v358
        %v555 = vpop.f32.mrb[0].mxu0
        %v556 = vadd.f32 %v313, %v555
        %v557 = vpop.f32.mrb[0].mxu0
        %v558 = vadd.f32 %v317, %v557
        %559 = vmatprep.mubr.f32.mxu0 0.0
        %560 = vmatmul.mubr.f32.gmra.mrb[0].mxu0 %v361
        %v561 = vpop.f32.mrb[0].mxu0
        %v562 = vadd.f32 %v313, %v561
        %v563 = vpop.f32.mrb[0].mxu0
        %v564 = vadd.f32 %v317, %v563
        %565 = vmatprep.mubr.f32.mxu0 0.0
        %566 = vmatmul.mubr.f32.gmra.mrb[0].mxu0 %v364
        %v567 = vpop.f32.mrb[0].mxu0
        %v568 = vadd.f32 %v313, %v567
        %v569 = vpop.f32.mrb[0].mxu0
        %v570 = vadd.f32 %v317, %v569
        %571 = vmatprep.mubr.f32.mxu0 0.0
        %572 = vmatmul.mubr.f32.gmra.mrb[0].mxu0 %v367
        %v573 = vpop.f32.mrb[0].mxu0
        %v574 = vadd.f32 %v313, %v573
        %v575 = vpop.f32.mrb[0].mxu0
        %v576 = vadd.f32 %v317, %v575
        %577 = vmatprep.mubr.f32.mxu0 0.0
        %578 = vmatmul.mubr.f32.gmra.mrb[0].mxu0 %v370
        %v579 = vpop.f32.mrb[0].mxu0
        %v580 = vadd.f32 %v313, %v579
        %v581 = vpop.f32.mrb[0].mxu0
        %v582 = vadd.f32 %v317, %v581
        %583 = vmatprep.mubr.f32.mxu0 0.0
        %584 = vmatmul.mubr.f32.gmra.mrb[0].mxu0 %v373
        %v585 = vpop.f32.mrb[0].mxu0
        %v586 = vadd.f32 %v313, %v585
        %v587 = vpop.f32.mrb[0].mxu0
        %v588 = vadd.f32 %v317, %v587
        %589 = vmatprep.mubr.f32.mxu0 0.0
        %590 = vmatmul.mubr.f32.gmra.mrb[0].mxu0 %v376
        %v591 = vpop.f32.mrb[0].mxu0
        %v592 = vadd.f32 %v313, %v591
        %v593 = vpop.f32.mrb[0].mxu0
        %v594 = vadd.f32 %v317, %v593
        %595 = vmatprep.mubr.f32.mxu0 0.0
        %596 = vmatmul.mubr.f32.gmra.mrb[0].mxu0 %v379
        %v597 = vpop.f32.mrb[0].mxu0
        %v598 = vadd.f32 %v313, %v597
        %v599 = vpop.f32.mrb[0].mxu0
        %v600 = vadd.f32 %v317, %v599
        %601 = vmatprep.mubr.f32.mxu0 0.0
        %602 = vmatmul.mubr.f32.gmra.mrb[0].mxu0 %v382
        %v603 = vpop.f32.mrb[0].mxu0
        %v604 = vadd.f32 %v313, %v603
        %v605 = vpop.f32.mrb[0].mxu0
        %v606 = vadd.f32 %v317, %v605
        %607 = vmatprep.mubr.f32.mxu0 0.0
        %608 = vmatmul.mubr.f32.gmra.mrb[0].mxu0 %v385
        %v609 = vpop.f32.mrb[0].mxu0
        %v610 = vadd.f32 %v313, %v609
        %v611 = vpop.f32.mrb[0].mxu0
        %v612 = vadd.f32 %v317, %v611
        %613 = vmatprep.mubr.f32.mxu0 0.0
        %614 = vmatmul.mubr.f32.gmra.mrb[0].mxu0 %v388
        %v615 = vpop.f32.mrb[0].mxu0
        %v616 = vadd.f32 %v313, %v615
        %v617 = vpop.f32.mrb[0].mxu0
        %v618 = vadd.f32 %v317, %v617
        %619 = vmatprep.mubr.f32.mxu0 0.0
        %620 = vmatmul.mubr.f32.gmra.mrb[0].mxu0 %v391
        %v621 = vpop.f32.mrb[0].mxu0
        %v622 = vadd.f32 %v313, %v621
        %v623 = vpop.f32.mrb[0].mxu0
        %v624 = vadd.f32 %v317, %v623
        %625 = vmatprep.mubr.f32.mxu0 0.0
        %626 = vmatmul.mubr.f32.gmra.mrb[0].mxu0 %v394
        %v627 = vpop.f32.mrb[0].mxu0
        %v628 = vadd.f32 %v313, %v627
        %v629 = vpop.f32.mrb[0].mxu0
        %v630 = vadd.f32 %v317, %v629
        %631 = vmatprep.mubr.f32.mxu0 0.0
        %632 = vmatmul.mubr.f32.gmra.mrb[0].mxu0 %v397
        %v633 = vpop.f32.mrb[0].mxu0
        %v634 = vadd.f32 %v313, %v633
        %v635 = vpop.f32.mrb[0].mxu0
        %v636 = vadd.f32 %v317, %v635
        %637 = vmatprep.mubr.f32.mxu0 0.0
        %638 = vmatmul.mubr.f32.gmra.mrb[0].mxu0 %v400
        %v639 = vpop.f32.mrb[0].mxu0
        %v640 = vadd.f32 %v313, %v639
        %v641 = vpop.f32.mrb[0].mxu0
        %v642 = vadd.f32 %v317, %v641
        %643 = vmatprep.mubr.f32.mxu0 0.0
        %644 = vmatmul.mubr.f32.gmra.mrb[0].mxu0 %v403
        %v645 = vpop.f32.mrb[0].mxu0
        %v646 = vadd.f32 %v313, %v645
        %v647 = vpop.f32.mrb[0].mxu0
        %v648 = vadd.f32 %v317, %v647
        %649 = vmatprep.mubr.f32.mxu0 0.0
        %650 = vmatmul.mubr.f32.gmra.mrb[0].mxu0 %v406
        %v651 = vpop.f32.mrb[0].mxu0
        %v652 = vadd.f32 %v313, %v651
        %v653 = vpop.f32.mrb[0].mxu0
        %v654 = vadd.f32 %v317, %v653
        %655 = vmatprep.mubr.f32.mxu0 0.0
        %656 = vmatmul.mubr.f32.gmra.mrb[0].mxu0 %v409
        %v657 = vpop.f32.mrb[0].mxu0
        %v658 = vadd.f32 %v313, %v657
        %v659 = vpop.f32.mrb[0].mxu0
        %v660 = vadd.f32 %v317, %v659
        %661 = vmatprep.mubr.f32.mxu0 0.0
        %662 = vmatmul.mubr.f32.gmra.mrb[0].mxu0 %v412
        %v663 = vpop.f32.mrb[0].mxu0
        %v664 = vadd.f32 %v313, %v663
        %v665 = vpop.f32.mrb[0].mxu0
        %v666 = vadd.f32 %v317, %v665
        %667 = vmatprep.mubr.f32.mxu0 0.0
        %668 = vmatmul.mubr.f32.gmra.mrb[0].mxu0 %v415
        %v669 = vpop.f32.mrb[0].mxu0
        %v670 = vadd.f32 %v313, %v669
        %v671 = vpop.f32.mrb[0].mxu0
        %v672 = vadd.f32 %v317, %v671
        %673 = vdwg.mxu0
        %674 = vst [vmem:[%s234] sm:$0xff] %v484
        %675 = vst [vmem:[%s234 + $0x10] sm:$0xff] %v490
        %676 = vst [vmem:[%s234 + $0x20] sm:$0xff] %v496
        %677 = vst [vmem:[%s234 + $0x30] sm:$0xff] %v502
        %678 = vst [vmem:[%s234 + $0x40] sm:$0xff] %v508
        %679 = vst [vmem:[%s234 + $0x50] sm:$0xff] %v514
        %680 = vst [vmem:[%s234 + $0x60] sm:$0xff] %v520
        %681 = vst [vmem:[%s234 + $0x70] sm:$0xff] %v526
        %682 = vst [vmem:[%s234 + $0x80] sm:$0xff] %v532
        %683 = vst [vmem:[%s234 + $0x90] sm:$0xff] %v538
        %684 = vst [vmem:[%s234 + $0xa0] sm:$0xff] %v544
        %685 = vst [vmem:[%s234 + $0xb0] sm:$0xff] %v550
        %686 = vst [vmem:[%s234 + $0xc0] sm:$0xff] %v556
        %687 = vst [vmem:[%s234 + $0xd0] sm:$0xff] %v562
        %688 = vst [vmem:[%s234 + $0xe0] sm:$0xff] %v568
        %689 = vst [vmem:[%s234 + $0xf0] sm:$0xff] %v574
        %690 = vst [vmem:[%s234 + $0x100] sm:$0xff] %v580
        %691 = vst [vmem:[%s234 + $0x110] sm:$0xff] %v586
        %692 = vst [vmem:[%s234 + $0x120] sm:$0xff] %v592
        %693 = vst [vmem:[%s234 + $0x130] sm:$0xff] %v598
        %694 = vst [vmem:[%s234 + $0x140] sm:$0xff] %v604
        %695 = vst [vmem:[%s234 + $0x150] sm:$0xff] %v610
        %696 = vst [vmem:[%s234 + $0x160] sm:$0xff] %v616
        %697 = vst [vmem:[%s234 + $0x170] sm:$0xff] %v622
        %698 = vst [vmem:[%s234 + $0x180] sm:$0xff] %v628
        %699 = vst [vmem:[%s234 + $0x190] sm:$0xff] %v634
        %700 = vst [vmem:[%s234 + $0x1a0] sm:$0xff] %v640
        %701 = vst [vmem:[%s234 + $0x1b0] sm:$0xff] %v646
        %702 = vst [vmem:[%s234 + $0x1c0] sm:$0xff] %v652
        %703 = vst [vmem:[%s234 + $0x1d0] sm:$0xff] %v658
        %704 = vst [vmem:[%s234 + $0x1e0] sm:$0xff] %v664
        %705 = vst [vmem:[%s234 + $0x1f0] sm:$0xff] %v670
        %v706 = vxor.u32 %v486, 2147483648
        %v707 = vxor.u32 %v492, 2147483648
        %v708 = vxor.u32 %v498, 2147483648
        %v709 = vxor.u32 %v504, 2147483648
        %v710 = vxor.u32 %v510, 2147483648
        %v711 = vxor.u32 %v516, 2147483648
        %v712 = vxor.u32 %v522, 2147483648
        %v713 = vxor.u32 %v528, 2147483648
        %v714 = vxor.u32 %v534, 2147483648
        %v715 = vxor.u32 %v540, 2147483648
        %v716 = vxor.u32 %v546, 2147483648
        %v717 = vxor.u32 %v552, 2147483648
        %v718 = vxor.u32 %v558, 2147483648
        %v719 = vxor.u32 %v564, 2147483648
        %v720 = vxor.u32 %v570, 2147483648
        %v721 = vxor.u32 %v576, 2147483648
        %v722 = vxor.u32 %v582, 2147483648
        %v723 = vxor.u32 %v588, 2147483648
        %v724 = vxor.u32 %v594, 2147483648
        %v725 = vxor.u32 %v600, 2147483648
        %v726 = vxor.u32 %v606, 2147483648
        %v727 = vxor.u32 %v612, 2147483648
        %v728 = vxor.u32 %v618, 2147483648
        %v729 = vxor.u32 %v624, 2147483648
        %v730 = vxor.u32 %v630, 2147483648
        %v731 = vxor.u32 %v636, 2147483648
        %v732 = vxor.u32 %v642, 2147483648
        %v733 = vxor.u32 %v648, 2147483648
        %v734 = vxor.u32 %v654, 2147483648
        %v735 = vxor.u32 %v660, 2147483648
        %v736 = vxor.u32 %v666, 2147483648
        %v737 = vxor.u32 %v672, 2147483648
        %v738 = vmul.f32 %v706, 1.442695
        %v739 = vpow.pop %v738
        %v740 = vmul.f32 %v707, 1.442695
        %v741 = vpow.pop %v740
        %v742 = vmul.f32 %v708, 1.442695
        %v743 = vpow.pop %v742
        %v744 = vmul.f32 %v709, 1.442695
        %v745 = vpow.pop %v744
        %v746 = vmul.f32 %v710, 1.442695
        %v747 = vpow.pop %v746
        %v748 = vmul.f32 %v711, 1.442695
        %v749 = vpow.pop %v748
        %v750 = vmul.f32 %v712, 1.442695
        %v751 = vpow.pop %v750
        %v752 = vmul.f32 %v713, 1.442695
        %v753 = vpow.pop %v752
        %v754 = vmul.f32 %v714, 1.442695
        %v755 = vpow.pop %v754
        %v756 = vmul.f32 %v715, 1.442695
        %v757 = vpow.pop %v756
        %v758 = vmul.f32 %v716, 1.442695
        %v759 = vpow.pop %v758
        %v760 = vmul.f32 %v717, 1.442695
        %v761 = vpow.pop %v760
        %v762 = vmul.f32 %v718, 1.442695
        %v763 = vpow.pop %v762
        %v764 = vmul.f32 %v719, 1.442695
        %v765 = vpow.pop %v764
        %v766 = vmul.f32 %v720, 1.442695
        %v767 = vpow.pop %v766
        %v768 = vmul.f32 %v721, 1.442695
        %v769 = vpow.pop %v768
        %v770 = vmul.f32 %v722, 1.442695
        %v771 = vpow.pop %v770
        %v772 = vmul.f32 %v723, 1.442695
        %v773 = vpow.pop %v772
        %v774 = vmul.f32 %v724, 1.442695
        %v775 = vpow.pop %v774
        %v776 = vmul.f32 %v725, 1.442695
        %v777 = vpow.pop %v776
        %v778 = vmul.f32 %v726, 1.442695
        %v779 = vpow.pop %v778
        %v780 = vmul.f32 %v727, 1.442695
        %v781 = vpow.pop %v780
        %v782 = vmul.f32 %v728, 1.442695
        %v783 = vpow.pop %v782
        %v784 = vmul.f32 %v729, 1.442695
        %v785 = vpow.pop %v784
        %v786 = vmul.f32 %v730, 1.442695
        %v787 = vpow.pop %v786
        %v788 = vmul.f32 %v731, 1.442695
        %v789 = vpow.pop %v788
        %v790 = vmul.f32 %v732, 1.442695
        %v791 = vpow.pop %v790
        %v792 = vmul.f32 %v733, 1.442695
        %v793 = vpow.pop %v792
        %v794 = vmul.f32 %v734, 1.442695
        %v795 = vpow.pop %v794
        %v796 = vmul.f32 %v735, 1.442695
        %v797 = vpow.pop %v796
        %v798 = vmul.f32 %v736, 1.442695
        %v799 = vpow.pop %v798
        %v800 = vmul.f32 %v737, 1.442695
        %v801 = vpow.pop %v800
        %v802 = vadd.f32 %v739, 1.0
        %v803 = vadd.f32 %v741, 1.0
        %v804 = vadd.f32 %v743, 1.0
        %v805 = vadd.f32 %v745, 1.0
        %v806 = vadd.f32 %v747, 1.0
        %v807 = vadd.f32 %v749, 1.0
        %v808 = vadd.f32 %v751, 1.0
        %v809 = vadd.f32 %v753, 1.0
        %v810 = vadd.f32 %v755, 1.0
        %v811 = vadd.f32 %v757, 1.0
        %v812 = vadd.f32 %v759, 1.0
        %v813 = vadd.f32 %v761, 1.0
        %v814 = vadd.f32 %v763, 1.0
        %v815 = vadd.f32 %v765, 1.0
        %v816 = vadd.f32 %v767, 1.0
        %v817 = vadd.f32 %v769, 1.0
        %v818 = vadd.f32 %v771, 1.0
        %v819 = vadd.f32 %v773, 1.0
        %v820 = vadd.f32 %v775, 1.0
        %v821 = vadd.f32 %v777, 1.0
        %v822 = vadd.f32 %v779, 1.0
        %v823 = vadd.f32 %v781, 1.0
        %v824 = vadd.f32 %v783, 1.0
        %v825 = vadd.f32 %v785, 1.0
        %v826 = vadd.f32 %v787, 1.0
        %v827 = vadd.f32 %v789, 1.0
        %v828 = vadd.f32 %v791, 1.0
        %v829 = vadd.f32 %v793, 1.0
        %v830 = vadd.f32 %v795, 1.0
        %v831 = vadd.f32 %v797, 1.0
        %v832 = vadd.f32 %v799, 1.0
        %v833 = vadd.f32 %v801, 1.0
        %v834 = vrcp.pop %v802
        %v835 = vmul.f32 1.0, %v834
        %v836 = vrcp.pop %v803
        %v837 = vmul.f32 1.0, %v836
        %v838 = vrcp.pop %v804
        %v839 = vmul.f32 1.0, %v838
        %v840 = vrcp.pop %v805
        %v841 = vmul.f32 1.0, %v840
        %v842 = vrcp.pop %v806
        %v843 = vmul.f32 1.0, %v842
        %v844 = vrcp.pop %v807
        %v845 = vmul.f32 1.0, %v844
        %v846 = vrcp.pop %v808
        %v847 = vmul.f32 1.0, %v846
        %v848 = vrcp.pop %v809
        %v849 = vmul.f32 1.0, %v848
        %v850 = vrcp.pop %v810
        %v851 = vmul.f32 1.0, %v850
        %v852 = vrcp.pop %v811
        %v853 = vmul.f32 1.0, %v852
        %v854 = vrcp.pop %v812
        %v855 = vmul.f32 1.0, %v854
        %v856 = vrcp.pop %v813
        %v857 = vmul.f32 1.0, %v856
        %v858 = vrcp.pop %v814
        %v859 = vmul.f32 1.0, %v858
        %v860 = vrcp.pop %v815
        %v861 = vmul.f32 1.0, %v860
        %v862 = vrcp.pop %v816
        %v863 = vmul.f32 1.0, %v862
        %v864 = vrcp.pop %v817
        %v865 = vmul.f32 1.0, %v864
        %v866 = vrcp.pop %v818
        %v867 = vmul.f32 1.0, %v866
        %v868 = vrcp.pop %v819
        %v869 = vmul.f32 1.0, %v868
        %v870 = vrcp.pop %v820
        %v871 = vmul.f32 1.0, %v870
        %v872 = vrcp.pop %v821
        %v873 = vmul.f32 1.0, %v872
        %v874 = vrcp.pop %v822
        %v875 = vmul.f32 1.0, %v874
        %v876 = vrcp.pop %v823
        %v877 = vmul.f32 1.0, %v876
        %v878 = vrcp.pop %v824
        %v879 = vmul.f32 1.0, %v878
        %v880 = vrcp.pop %v825
        %v881 = vmul.f32 1.0, %v880
        %v882 = vrcp.pop %v826
        %v883 = vmul.f32 1.0, %v882
        %v884 = vrcp.pop %v827
        %v885 = vmul.f32 1.0, %v884
        %v886 = vrcp.pop %v828
        %v887 = vmul.f32 1.0, %v886
        %v888 = vrcp.pop %v829
        %v889 = vmul.f32 1.0, %v888
        %v890 = vrcp.pop %v830
        %v891 = vmul.f32 1.0, %v890
        %v892 = vrcp.pop %v831
        %v893 = vmul.f32 1.0, %v892
        %v894 = vrcp.pop %v832
        %v895 = vmul.f32 1.0, %v894
        %v896 = vrcp.pop %v833
        %v897 = vmul.f32 1.0, %v896
        %vm898 = vcmask 64512
        %899 = vst.msk [vmem:[%s234 + $0x8] sm:$0xff] %vm898, %v835
        %900 = vst.msk [vmem:[%s234 + $0x18] sm:$0xff] %vm898, %v837
        %901 = vst.msk [vmem:[%s234 + $0x28] sm:$0xff] %vm898, %v839
        %902 = vst.msk [vmem:[%s234 + $0x38] sm:$0xff] %vm898, %v841
        %903 = vst.msk [vmem:[%s234 + $0x48] sm:$0xff] %vm898, %v843
        %904 = vst.msk [vmem:[%s234 + $0x58] sm:$0xff] %vm898, %v845
        %905 = vst.msk [vmem:[%s234 + $0x68] sm:$0xff] %vm898, %v847
        %906 = vst.msk [vmem:[%s234 + $0x78] sm:$0xff] %vm898, %v849
        %907 = vst.msk [vmem:[%s234 + $0x88] sm:$0xff] %vm898, %v851
        %908 = vst.msk [vmem:[%s234 + $0x98] sm:$0xff] %vm898, %v853
        %909 = vst.msk [vmem:[%s234 + $0xa8] sm:$0xff] %vm898, %v855
        %910 = vst.msk [vmem:[%s234 + $0xb8] sm:$0xff] %vm898, %v857
        %911 = vst.msk [vmem:[%s234 + $0xc8] sm:$0xff] %vm898, %v859
        %912 = vst.msk [vmem:[%s234 + $0xd8] sm:$0xff] %vm898, %v861
        %913 = vst.msk [vmem:[%s234 + $0xe8] sm:$0xff] %vm898, %v863
        %914 = vst.msk [vmem:[%s234 + $0xf8] sm:$0xff] %vm898, %v865
        %915 = vst.msk [vmem:[%s234 + $0x108] sm:$0xff] %vm898, %v867
        %916 = vst.msk [vmem:[%s234 + $0x118] sm:$0xff] %vm898, %v869
        %917 = vst.msk [vmem:[%s234 + $0x128] sm:$0xff] %vm898, %v871
        %918 = vst.msk [vmem:[%s234 + $0x138] sm:$0xff] %vm898, %v873
        %919 = vst.msk [vmem:[%s234 + $0x148] sm:$0xff] %vm898, %v875
        %920 = vst.msk [vmem:[%s234 + $0x158] sm:$0xff] %vm898, %v877
        %921 = vst.msk [vmem:[%s234 + $0x168] sm:$0xff] %vm898, %v879
        %922 = vst.msk [vmem:[%s234 + $0x178] sm:$0xff] %vm898, %v881
        %923 = vst.msk [vmem:[%s234 + $0x188] sm:$0xff] %vm898, %v883
        %924 = vst.msk [vmem:[%s234 + $0x198] sm:$0xff] %vm898, %v885
        %925 = vst.msk [vmem:[%s234 + $0x1a8] sm:$0xff] %vm898, %v887
        %926 = vst.msk [vmem:[%s234 + $0x1b8] sm:$0xff] %vm898, %v889
        %927 = vst.msk [vmem:[%s234 + $0x1c8] sm:$0xff] %vm898, %v891
        %928 = vst.msk [vmem:[%s234 + $0x1d8] sm:$0xff] %vm898, %v893
        %929 = vst.msk [vmem:[%s234 + $0x1e8] sm:$0xff] %vm898, %v895
        %930 = vst.msk [vmem:[%s234 + $0x1f8] sm:$0xff] %vm898, %v897
        %s931 = smul.u32 32, %s23
        %p932 = scmp.lt.s32.totalorder %s22, 1
        %s933 = scalar_select %p932, %s22, 1
        %p934 = scmp.lt.s32.totalorder %s931, 31
        %s935 = scalar_select %p934, %s931, 31
        %s936 = smul.addr %s935, 2
        %s937 = smul.addr %s933, 64
        %s938 = sadd.s32 %s936, %s937
        %s939 = smul.addr %s938, 8
        %s940 = scalar_lea.vmem %s3, %s939
        // Predicated region
        $region41: #{tpu_custom_call.1} parent=31 // pred_check
          %p941 = pneg %p120
        $region42: #{tpu_custom_call.1} parent=31 // pred_check_branch
          %943 = sbr.rel (%p941) target = $region44
        $region43: #{tpu_custom_call.1} parent=31 // pred_region
          %s944 = smul.u32 32, %s23
        $region44: #{tpu_custom_call.1} parent=31 // pred_fallthru
          _
      $region32: #{tpu_custom_call.1} parent=5 // pred_fallthru
        _
      %p945 = scmp.le.s32.totalorder 2, %s13
      // Predicated region
      $region45: #{tpu_custom_call.1} parent=5 // pred_check
        %p946 = pneg %p945
      $region46: #{tpu_custom_call.1} parent=5 // pred_check_branch
        %948 = sbr.rel (%p946) target = $region48
      $region47: #{tpu_custom_call.1} parent=5 // pred_region
        %s949 = ssub.s32 %s13, 2
        // Predicated region
        $region49: #{tpu_custom_call.1} parent=47 // pred_check
          %p950 = pneg %p126
        $region50: #{tpu_custom_call.1} parent=47 // pred_check_branch
          %952 = sbr.rel (%p950) target = $region52
        $region51: #{tpu_custom_call.1} parent=47 // pred_region
          %s953 = smul.u32 32, %s25
          %p954 = scmp.lt.s32.totalorder %s24, 1
          %s955 = scalar_select %p954, %s24, 1
          %p956 = scmp.lt.s32.totalorder %s953, 31
          %s957 = scalar_select %p956, %s953, 31
          %s958 = smul.addr %s957, 2
          %s959 = smul.addr %s955, 64
          %s960 = sadd.s32 %s958, %s959
          %s961 = smul.addr %s960, 8
          %s962 = scalar_lea.vmem %s3, %s961
        $region52: #{tpu_custom_call.1} parent=47 // pred_fallthru
          _
      $region48: #{tpu_custom_call.1} parent=5 // pred_fallthru
        _
    $region6: #{tpu_custom_call.1} parent=1 // loop_footer
      %s17 = sadd.s32 1, %s13
    $region7: #{tpu_custom_call.1} parent=1 // loop_footer_branch
      %12 = sbr.rel target = $region3
    $region8: #{tpu_custom_call.1} parent=1 // loop_exit
      _
    %963 = vsyncpa [#allocation3], 1
    %s964 = scalar_lea.sflag [#allocation3], 1
    %965 = vsyncpa %s964, 1
    %966 = vsyncpa [#allocation5], 1

</llo_original>
